<compile_context>
chip_gen: v6e
topology: v6e:2x2x1
jax: 0.10.0
libtpu: 0.0.40
codegen_flags: <defaults>
</compile_context>

<pallas_src>
import functools

import jax
import jax.numpy as jnp
from jax.experimental import pallas as pl
from jax.experimental.pallas import tpu as pltpu


# ----------------------------- Pallas kernel --------------------------------
def encoder_kernel(x_ref, wrow_ref, bias_ref, wl_ref, bl_ref, out_ref, *,
                   H, inv_hw):
    # x_ref:    (1, H+2, (W+2)*Cin) bf16   zero-padded image, (w, c) packed in lanes
    # wrow_ref: (3, (W+2)*Cin, W*Cout) bf16 per-kernel-row band matrices
    #                                      (dw shift + conv weights folded in)
    # bias_ref: (1, W*Cout) f32            conv bias tiled over w
    # wl_ref:   (W*Cout, D) f32            linear weight tiled so pooling folds in
    # bl_ref:   (1, D) f32
    # out_ref:  (1, 1, D) f32              one row per image
    x = x_ref[0]                                               # (H+2, (W+2)*Cin)

    # 3x3 conv == sum over kernel rows dh of (shifted rows) @ band matrix.
    conv = jnp.dot(x[0:H, :], wrow_ref[0],
                   preferred_element_type=jnp.float32)         # (H, W*Cout)
    conv += jnp.dot(x[1:H + 1, :], wrow_ref[1],
                    preferred_element_type=jnp.float32)
    conv += jnp.dot(x[2:H + 2, :], wrow_ref[2],
                    preferred_element_type=jnp.float32)

    relu = jnp.maximum(conv + bias_ref[...], 0.0)              # (H, W*Cout)

    # Global average pool: sum over h here; the sum over w (and the mean scale)
    # is folded into the row-tiled linear weight wl_ref.
    col_sum = jnp.sum(relu, axis=0, keepdims=True)             # (1, W*Cout)
    z = jnp.dot(col_sum * inv_hw, wl_ref[...],
                preferred_element_type=jnp.float32)            # (1, D)
    out_ref[...] = (z + bl_ref[...])[None]                     # (1, 1, D)


# ------------------------------ JAX glue -------------------------------------
def inference_encoder_forward(x_nchw, params):
    """Equivalent of InferenceEncoder.forward: z = model(x)."""
    N, cin, H, W = x_nchw.shape
    wc, bc, wl, bl = params["wc"], params["bc"], params["wl"], params["bl"]
    cout = wc.shape[0]
    d_out = wl.shape[0]

    # Packed, spatially zero-padded input rows: (N, H+2, (W+2)*Cin), bf16.
    x_nhwc = jnp.transpose(x_nchw, (0, 2, 3, 1))
    xp = jnp.pad(x_nhwc, ((0, 0), (1, 1), (1, 1), (0, 0)))
    x_rows = xp.reshape(N, H + 2, (W + 2) * cin).astype(jnp.bfloat16)

    # Row-band matrices: Brow[dh, (w+dw)*Cin + c, w*Cout + o] = wc[o, c, dh, dw].
    rows = []
    for dh in range(3):
        band = jnp.zeros(((W + 2) * cin, W * cout), jnp.float32)
        for dw in range(3):
            band = band + jnp.kron(
                jnp.eye(W + 2, W, k=-dw, dtype=jnp.float32),
                wc[:, :, dh, dw].T)
        rows.append(band)
    wrow = jnp.stack(rows).astype(jnp.bfloat16)        # (3, (W+2)*Cin, W*Cout)

    bias_packed = jnp.tile(bc, W)[None, :].astype(jnp.float32)   # (1, W*Cout)
    wl_packed = jnp.tile(wl.T, (W, 1)).astype(jnp.float32)       # (W*Cout, D)
    bl_row = bl[None, :].astype(jnp.float32)                     # (1, D)

    kernel = functools.partial(encoder_kernel, H=H, inv_hw=1.0 / (H * W))

    # TODO(synk): for very large images, add a row-band grid axis (with halo
    # rows) instead of one whole image per grid step.
    grid_spec = pltpu.PrefetchScalarGridSpec(
        num_scalar_prefetch=0,
        grid=(N,),
        in_specs=[
            pl.BlockSpec((1, H + 2, (W + 2) * cin), lambda n: (n, 0, 0)),
            pl.BlockSpec((3, (W + 2) * cin, W * cout), lambda n: (0, 0, 0)),
            pl.BlockSpec((1, W * cout), lambda n: (0, 0)),
            pl.BlockSpec((W * cout, d_out), lambda n: (0, 0)),
            pl.BlockSpec((1, d_out), lambda n: (0, 0)),
        ],
        out_specs=pl.BlockSpec((1, 1, d_out), lambda n: (n, 0, 0)),
    )

    out3 = pl.pallas_call(
        kernel,
        out_shape=jax.ShapeDtypeStruct((N, 1, d_out), jnp.float32),
        grid_spec=grid_spec,
        compiler_params=pltpu.CompilerParams(
            dimension_semantics=("parallel",),
            vmem_limit_bytes=32 * 1024 * 1024),
    )(x_rows, wrow, bias_packed, wl_packed, bl_row)
    return out3.reshape(N, d_out)


# ----------------------- params + pure-JAX reference -------------------------
def init_params(key, cin=4, cout=8, d_out=32, k=3):
    k1, k2, k3, k4 = jax.random.split(key, 4)
    # torch-style layouts: Conv2d weight (Cout, Cin, K, K), Linear weight (D, Cout)
    wc = jax.random.normal(k1, (cout, cin, k, k), jnp.float32) * 0.1
    bc = jax.random.normal(k2, (cout,), jnp.float32) * 0.1
    wl = jax.random.normal(k3, (d_out, cout), jnp.float32) * 0.1
    bl = jax.random.normal(k4, (d_out,), jnp.float32) * 0.1
    return {"wc": wc, "bc": bc, "wl": wl, "bl": bl}


def im2col_3x3(x_nhwc):
    """Extract 3x3 zero-padded patches; returns (N*H*W, 9*C), tap-major cols."""
    N, H, W, C = x_nhwc.shape
    xp = jnp.pad(x_nhwc, ((0, 0), (1, 1), (1, 1), (0, 0)))
    cols = [xp[:, dh:dh + H, dw:dw + W, :] for dh in range(3) for dw in range(3)]
    patches = jnp.stack(cols, axis=3)                 # (N, H, W, 9, C)
    return patches.reshape(N * H * W, 9 * C)


def reference_forward(x_nchw, params):
    """Pure-JAX reference using the same bf16-in / f32-accumulate numerics."""
    N, C, H, W = x_nchw.shape
    x_nhwc = jnp.transpose(x_nchw, (0, 2, 3, 1))
    patches = im2col_3x3(x_nhwc).astype(jnp.bfloat16)            # (N*HW, 9C)
    wc_flat = jnp.transpose(params["wc"], (2, 3, 1, 0)).reshape(9 * C, -1)
    conv = jnp.dot(patches, wc_flat.astype(jnp.bfloat16),
                   preferred_element_type=jnp.float32) + params["bc"][None, :]
    conv = jnp.maximum(conv, 0.0)
    pooled = conv.reshape(N, H * W, -1).mean(axis=1)
    return jnp.dot(pooled, params["wl"].T,
                   preferred_element_type=jnp.float32) + params["bl"][None, :]


if __name__ == "__main__":
    # TODO(synk): the PyTorch class is abstract (_build unimplemented); this is one
    # concrete deterministic instantiation of `self.model`, not a checkpoint load.
    key = jax.random.PRNGKey(0)
    x = jax.random.normal(key, (2, 4, 16, 16), jnp.float32)   # NCHW, like PyTorch
    params = init_params(jax.random.PRNGKey(42))

    z = inference_encoder_forward(x, params)
    jax.block_until_ready(z)

    z_ref = reference_forward(x, params)
    assert z.shape == (2, 32)
    assert jnp.allclose(z, z_ref, atol=2e-3, rtol=2e-3), \
        float(jnp.max(jnp.abs(z - z_ref)))
    print("KERNEL_OK")
</pallas_src>

<mosaic_0001>
module attributes {stable_mosaic.version = 11 : i64} {
  func.func @encoder_kernel(%arg0: i32, %arg1: memref<1x18x72xbf16, #tpu.memory_space<vmem>>, %arg2: memref<3x72x128xbf16, #tpu.memory_space<vmem>>, %arg3: memref<1x128xf32, #tpu.memory_space<vmem>>, %arg4: memref<128x32xf32, #tpu.memory_space<vmem>>, %arg5: memref<1x32xf32, #tpu.memory_space<vmem>>, %arg6: memref<1x1x32xf32, #tpu.memory_space<vmem>>) attributes {dimension_semantics = [#tpu.dimension_semantics<parallel>], iteration_bounds = array<i64: 2>, scalar_prefetch = 0 : i64, scratch_operands = 0 : i64, tpu.core_type = #tpu.core_type<tc>, window_params = [{transform_indices = @transform_0, window_bounds = array<i64: 1, 18, 72>}, {pipeline_mode = #tpu.pipeline_mode<synchronous>, transform_indices = @transform_1, window_bounds = array<i64: 3, 72, 128>}, {pipeline_mode = #tpu.pipeline_mode<synchronous>, transform_indices = @transform_2, window_bounds = array<i64: 1, 128>}, {pipeline_mode = #tpu.pipeline_mode<synchronous>, transform_indices = @transform_3, window_bounds = array<i64: 128, 32>}, {pipeline_mode = #tpu.pipeline_mode<synchronous>, transform_indices = @transform_4, window_bounds = array<i64: 1, 32>}, {transform_indices = @transform_5, window_bounds = array<i64: 1, 1, 32>}]} {
    %c0 = arith.constant 0 : index
    %c0_0 = arith.constant 0 : index
    %c0_1 = arith.constant 0 : index
    %0 = vector.load %arg1[%c0, %c0_0, %c0_1] : memref<1x18x72xbf16, #tpu.memory_space<vmem>>, vector<1x18x72xbf16>
    %1 = vector.shape_cast %0 : vector<1x18x72xbf16> to vector<18x72xbf16>
    %2 = vector.extract_strided_slice %1 {offsets = [0, 0], sizes = [16, 72], strides = [1, 1]} : vector<18x72xbf16> to vector<16x72xbf16>
    %c0_2 = arith.constant 0 : index
    %c0_3 = arith.constant 0 : index
    %c0_4 = arith.constant 0 : index
    %3 = vector.load %arg2[%c0_2, %c0_3, %c0_4] : memref<3x72x128xbf16, #tpu.memory_space<vmem>>, vector<1x72x128xbf16>
    %4 = vector.shape_cast %3 : vector<1x72x128xbf16> to vector<72x128xbf16>
    %cst = arith.constant dense<0.000000e+00> : vector<16x128xf32>
    %5 = tpu.matmul %2, %4, %cst {dimension_numbers = #tpu.dot_dimension_numbers<[1], [0], [0], [1], [0, 0, 1, 1], [], []>} : vector<16x72xbf16>, vector<72x128xbf16>, vector<16x128xf32> -> vector<16x128xf32>
    %6 = vector.extract_strided_slice %1 {offsets = [1, 0], sizes = [16, 72], strides = [1, 1]} : vector<18x72xbf16> to vector<16x72xbf16>
    %c1 = arith.constant 1 : index
    %c0_5 = arith.constant 0 : index
    %c0_6 = arith.constant 0 : index
    %7 = vector.load %arg2[%c1, %c0_5, %c0_6] : memref<3x72x128xbf16, #tpu.memory_space<vmem>>, vector<1x72x128xbf16>
    %8 = vector.shape_cast %7 : vector<1x72x128xbf16> to vector<72x128xbf16>
    %cst_7 = arith.constant dense<0.000000e+00> : vector<16x128xf32>
    %9 = tpu.matmul %6, %8, %cst_7 {dimension_numbers = #tpu.dot_dimension_numbers<[1], [0], [0], [1], [0, 0, 1, 1], [], []>} : vector<16x72xbf16>, vector<72x128xbf16>, vector<16x128xf32> -> vector<16x128xf32>
    %10 = arith.addf %5, %9 : vector<16x128xf32>
    %11 = vector.extract_strided_slice %1 {offsets = [2, 0], sizes = [16, 72], strides = [1, 1]} : vector<18x72xbf16> to vector<16x72xbf16>
    %c2 = arith.constant 2 : index
    %c0_8 = arith.constant 0 : index
    %c0_9 = arith.constant 0 : index
    %12 = vector.load %arg2[%c2, %c0_8, %c0_9] : memref<3x72x128xbf16, #tpu.memory_space<vmem>>, vector<1x72x128xbf16>
    %13 = vector.shape_cast %12 : vector<1x72x128xbf16> to vector<72x128xbf16>
    %cst_10 = arith.constant dense<0.000000e+00> : vector<16x128xf32>
    %14 = tpu.matmul %11, %13, %cst_10 {dimension_numbers = #tpu.dot_dimension_numbers<[1], [0], [0], [1], [0, 0, 1, 1], [], []>} : vector<16x72xbf16>, vector<72x128xbf16>, vector<16x128xf32> -> vector<16x128xf32>
    %15 = arith.addf %10, %14 : vector<16x128xf32>
    %c0_11 = arith.constant 0 : index
    %c0_12 = arith.constant 0 : index
    %16 = vector.load %arg3[%c0_11, %c0_12] : memref<1x128xf32, #tpu.memory_space<vmem>>, vector<1x128xf32>
    %17 = vector.broadcast %16 : vector<1x128xf32> to vector<16x128xf32>
    %18 = arith.addf %15, %17 : vector<16x128xf32>
    %cst_13 = arith.constant 0.000000e+00 : f32
    %19 = vector.broadcast %cst_13 : f32 to vector<16x128xf32>
    %20 = arith.maximumf %18, %19 : vector<16x128xf32>
    %cst_14 = arith.constant dense<0.000000e+00> : vector<128xf32>
    %21 = vector.multi_reduction <add>, %20, %cst_14 [0] : vector<16x128xf32> to vector<128xf32>
    %22 = vector.shape_cast %21 : vector<128xf32> to vector<1x128xf32>
    %cst_15 = arith.constant 3.906250e-03 : f32
    %23 = vector.broadcast %cst_15 : f32 to vector<1x128xf32>
    %24 = arith.mulf %22, %23 : vector<1x128xf32>
    %c0_16 = arith.constant 0 : index
    %c0_17 = arith.constant 0 : index
    %25 = vector.load %arg4[%c0_16, %c0_17] : memref<128x32xf32, #tpu.memory_space<vmem>>, vector<128x32xf32>
    %cst_18 = arith.constant dense<0.000000e+00> : vector<1x32xf32>
    %26 = tpu.matmul %24, %25, %cst_18 {dimension_numbers = #tpu.dot_dimension_numbers<[1], [0], [0], [1], [0, 0, 1, 1], [], []>} : vector<1x128xf32>, vector<128x32xf32>, vector<1x32xf32> -> vector<1x32xf32>
    %c0_19 = arith.constant 0 : index
    %c0_20 = arith.constant 0 : index
    %27 = vector.load %arg5[%c0_19, %c0_20] : memref<1x32xf32, #tpu.memory_space<vmem>>, vector<1x32xf32>
    %28 = arith.addf %26, %27 : vector<1x32xf32>
    %29 = vector.shape_cast %28 : vector<1x32xf32> to vector<1x1x32xf32>
    %c0_21 = arith.constant 0 : index
    %c0_22 = arith.constant 0 : index
    %c0_23 = arith.constant 0 : index
    %30 = vector.load %arg6[%c0_21, %c0_22, %c0_23] : memref<1x1x32xf32, #tpu.memory_space<vmem>>, vector<1x1x32xf32>
    tpu.vector_store %arg6[%c0_21, %c0_22, %c0_23], %29 {strides = array<i32>} : memref<1x1x32xf32, #tpu.memory_space<vmem>>, vector<1x1x32xf32>,
    return
  }
  func.func @transform_0(%arg0: i32) -> (i32, i32, i32) {
    %c0_i32 = arith.constant 0 : i32
    %c0_i32_0 = arith.constant 0 : i32
    %c0_i32_1 = arith.constant 0 : i32
    return %arg0, %c0_i32, %c0_i32_0 : i32, i32, i32
  }
  func.func @transform_1(%arg0: i32) -> (i32, i32, i32) {
    %c0_i32 = arith.constant 0 : i32
    %c0_i32_0 = arith.constant 0 : i32
    %c0_i32_1 = arith.constant 0 : i32
    %c0_i32_2 = arith.constant 0 : i32
    return %c0_i32, %c0_i32_0, %c0_i32_1 : i32, i32, i32
  }
  func.func @transform_2(%arg0: i32) -> (i32, i32) {
    %c0_i32 = arith.constant 0 : i32
    %c0_i32_0 = arith.constant 0 : i32
    %c0_i32_1 = arith.constant 0 : i32
    return %c0_i32, %c0_i32_0 : i32, i32
  }
  func.func @transform_3(%arg0: i32) -> (i32, i32) {
    %c0_i32 = arith.constant 0 : i32
    %c0_i32_0 = arith.constant 0 : i32
    %c0_i32_1 = arith.constant 0 : i32
    return %c0_i32, %c0_i32_0 : i32, i32
  }
  func.func @transform_4(%arg0: i32) -> (i32, i32) {
    %c0_i32 = arith.constant 0 : i32
    %c0_i32_0 = arith.constant 0 : i32
    %c0_i32_1 = arith.constant 0 : i32
    return %c0_i32, %c0_i32_0 : i32, i32
  }
  func.func @transform_5(%arg0: i32) -> (i32, i32, i32) {
    %c0_i32 = arith.constant 0 : i32
    %c0_i32_0 = arith.constant 0 : i32
    %c0_i32_1 = arith.constant 0 : i32
    return %arg0, %c0_i32, %c0_i32_0 : i32, i32, i32
  }
}

</mosaic_0001>

<llo_original>
// kernel: tpu_custom_call.1
$region0: #{tpu_custom_call.1}
  #allocation0 [shape = 'u32[]', space=smem, size = 0x4, offset = 0x4, fixed_abs, tag = 'smem constant byte address 0x4 - core index']
  #allocation1 [shape = 'u32[144,128]{1,0:T(1,128)}', space=vmem, size = 0x12000, scoped, tag = 'internal scratch']
  %s0 = inlined_call_operand.vmem [shape: bf16[2,18,72], index: 0, kind: input, shape index: {}]
  %s1 = inlined_call_operand.vmem [shape: bf16[3,72,128], index: 1, kind: input, shape index: {}]
  %s2 = inlined_call_operand.vmem [shape: f32[1,128], index: 2, kind: input, shape index: {}]
  %s3 = inlined_call_operand.vmem [shape: f32[128,32], index: 3, kind: input, shape index: {}]
  %s4 = inlined_call_operand.vmem [shape: f32[1,32], index: 4, kind: input, shape index: {}]
  %s5 = inlined_call_operand.hbm [shape: f32[2,1,32], index: 5, kind: output, shape index: {}]
  %s6 = sld [smem:[#allocation0]]
  $region53: #{tpu_custom_call.1} parent=0
    _
  %s8 = ssub.s32 1, %s6
  %s9 = scalar_select 0, %s8, %s6
  $region1: #{tpu_custom_call.1} parent=0
    #allocation2 [shape = 'u8[1024]{0}', space=vmem, size = 0x400, scoped, tag = 'output window, operand 0']
    #allocation3 [shape = 's32[2]{0}', space=sflag, size = 0x8, scoped, tag = 'scoped memory for tpu_custom_call.1']
    %10 = vsyncpa [#allocation3], 0
    %s11 = scalar_lea.sflag [#allocation3], 1
    %12 = vsyncpa %s11, 0
    loop: start=0, step=1, limit=4
    $region2: #{tpu_custom_call.1} parent=1 // loop_pre_header
      _
    $region3: #{tpu_custom_call.1} parent=1 // loop_header
      %s14 = sphi 0, %s18
      %p15 = scmp.ge.s32.totalorder %s14, 4
      %s24 = sphi 0, %s26
      %s27 = sphi 0, %s24
      %s28 = sphi 0, %s27
      %s44 = sphi 0, %s28
      %s48 = sphi 0, %s48
      %s50 = sphi 0, %s48
      %s51 = sphi 0, %s50
      %s65 = sphi 0, %s51
      %s69 = sphi 0, %s69
      %s71 = sphi 0, %s69
      %s72 = sphi 0, %s71
      %s86 = sphi 0, %s72
      %s90 = sphi 0, %s90
      %s92 = sphi 0, %s90
      %s93 = sphi 0, %s92
      %s107 = sphi 0, %s93
      %s111 = sphi 0, %s111
      %s113 = sphi 0, %s111
      %s114 = sphi 0, %s113
      %s128 = sphi 0, %s114
      %s134 = sphi 0, %s136
      %s137 = sphi 0, %s134
      %s138 = sphi 0, %s137
      %s154 = sphi 0, %s138
    $region4: #{tpu_custom_call.1} parent=1 // loop_header_branch
      %17 = sbr.rel (%p15) target = $region8
    $region5: #{tpu_custom_call.1} parent=1 // loop_body
      %s19 = ssub.s32 %s14, 1
      %s20 = ssub.s32 %s14, 2
      %s21 = sadd.s32 %s14, 1
      %s22 = ssub.s32 %s14, %s21
      %p23 = scmp.eq.s32.totalorder %s22, 0
      %s25 = sadd.s32 %s24, 1
      %s26 = scalar_select %p23, %s24, %s25
      %p29 = pneg %p23
      %p30 = scmp.eq.s32.totalorder %s14, 1
      %p31 = por %p29, %p30
      %p32 = scmp.ne.s32.totalorder %s24, %s27
      %p33 = scmp.eq.s32.totalorder %s14, 0
      %p34 = por %p32, %p33
      %p35 = scmp.ne.s32.totalorder %s24, %s27
      %p36 = scmp.eq.s32.totalorder %s19, 1
      %p37 = por %p35, %p36
      %p38 = scmp.ne.s32.totalorder %s27, %s28
      %p39 = scmp.eq.s32.totalorder %s19, 0
      %p40 = por %p38, %p39
      %p41 = scmp.ne.s32.totalorder %s27, %s28
      %p42 = scmp.eq.s32.totalorder %s20, 1
      %p43 = por %p41, %p42
      %p45 = scmp.ne.s32.totalorder %s28, %s44
      %p46 = scmp.eq.s32.totalorder %s20, 0
      %p47 = por %p45, %p46
      %s49 = sadd.s32 %s48, 1
      %p52 = scmp.eq.s32.totalorder %s14, 1
      %p53 = scmp.ne.s32.totalorder %s48, %s50
      %p54 = scmp.eq.s32.totalorder %s14, 0
      %p55 = por %p53, %p54
      %p56 = scmp.ne.s32.totalorder %s48, %s50
      %p57 = scmp.eq.s32.totalorder %s19, 1
      %p58 = por %p56, %p57
      %p59 = scmp.ne.s32.totalorder %s50, %s51
      %p60 = scmp.eq.s32.totalorder %s19, 0
      %p61 = por %p59, %p60
      %p62 = scmp.ne.s32.totalorder %s50, %s51
      %p63 = scmp.eq.s32.totalorder %s20, 1
      %p64 = por %p62, %p63
      %p66 = scmp.ne.s32.totalorder %s51, %s65
      %p67 = scmp.eq.s32.totalorder %s20, 0
      %p68 = por %p66, %p67
      %s70 = sadd.s32 %s69, 1
      %p73 = scmp.eq.s32.totalorder %s14, 1
      %p74 = scmp.ne.s32.totalorder %s69, %s71
      %p75 = scmp.eq.s32.totalorder %s14, 0
      %p76 = por %p74, %p75
      %p77 = scmp.ne.s32.totalorder %s69, %s71
      %p78 = scmp.eq.s32.totalorder %s19, 1
      %p79 = por %p77, %p78
      %p80 = scmp.ne.s32.totalorder %s71, %s72
      %p81 = scmp.eq.s32.totalorder %s19, 0
      %p82 = por %p80, %p81
      %p83 = scmp.ne.s32.totalorder %s71, %s72
      %p84 = scmp.eq.s32.totalorder %s20, 1
      %p85 = por %p83, %p84
      %p87 = scmp.ne.s32.totalorder %s72, %s86
      %p88 = scmp.eq.s32.totalorder %s20, 0
      %p89 = por %p87, %p88
      %s91 = sadd.s32 %s90, 1
      %p94 = scmp.eq.s32.totalorder %s14, 1
      %p95 = scmp.ne.s32.totalorder %s90, %s92
      %p96 = scmp.eq.s32.totalorder %s14, 0
      %p97 = por %p95, %p96
      %p98 = scmp.ne.s32.totalorder %s90, %s92
      %p99 = scmp.eq.s32.totalorder %s19, 1
      %p100 = por %p98, %p99
      %p101 = scmp.ne.s32.totalorder %s92, %s93
      %p102 = scmp.eq.s32.totalorder %s19, 0
      %p103 = por %p101, %p102
      %p104 = scmp.ne.s32.totalorder %s92, %s93
      %p105 = scmp.eq.s32.totalorder %s20, 1
      %p106 = por %p104, %p105
      %p108 = scmp.ne.s32.totalorder %s93, %s107
      %p109 = scmp.eq.s32.totalorder %s20, 0
      %p110 = por %p108, %p109
      %s112 = sadd.s32 %s111, 1
      %p115 = scmp.eq.s32.totalorder %s14, 1
      %p116 = scmp.ne.s32.totalorder %s111, %s113
      %p117 = scmp.eq.s32.totalorder %s14, 0
      %p118 = por %p116, %p117
      %p119 = scmp.ne.s32.totalorder %s111, %s113
      %p120 = scmp.eq.s32.totalorder %s19, 1
      %p121 = por %p119, %p120
      %p122 = scmp.ne.s32.totalorder %s113, %s114
      %p123 = scmp.eq.s32.totalorder %s19, 0
      %p124 = por %p122, %p123
      %p125 = scmp.ne.s32.totalorder %s113, %s114
      %p126 = scmp.eq.s32.totalorder %s20, 1
      %p127 = por %p125, %p126
      %p129 = scmp.ne.s32.totalorder %s114, %s128
      %p130 = scmp.eq.s32.totalorder %s20, 0
      %p131 = por %p129, %p130
      %s132 = ssub.s32 %s14, %s21
      %p133 = scmp.eq.s32.totalorder %s132, 0
      %s135 = sadd.s32 %s134, 1
      %s136 = scalar_select %p133, %s134, %s135
      %p139 = pneg %p133
      %p140 = scmp.eq.s32.totalorder %s14, 1
      %p141 = por %p139, %p140
      %p142 = scmp.ne.s32.totalorder %s134, %s137
      %p143 = scmp.eq.s32.totalorder %s14, 0
      %p144 = por %p142, %p143
      %p145 = scmp.ne.s32.totalorder %s134, %s137
      %p146 = scmp.eq.s32.totalorder %s19, 1
      %p147 = por %p145, %p146
      %p148 = scmp.ne.s32.totalorder %s137, %s138
      %p149 = scmp.eq.s32.totalorder %s19, 0
      %p150 = por %p148, %p149
      %p151 = scmp.ne.s32.totalorder %s137, %s138
      %p152 = scmp.eq.s32.totalorder %s20, 1
      %p153 = por %p151, %p152
      %p155 = scmp.ne.s32.totalorder %s138, %s154
      %p156 = scmp.eq.s32.totalorder %s20, 0
      %p157 = por %p155, %p156
      %p158 = scmp.le.s32.totalorder 1, %s14
      %p159 = scmp.lt.s32.totalorder %s14, 3
      %p160 = pnand %p158, %p159
      %p161 = pneg %p160
      // Predicated region
      $region9: #{tpu_custom_call.1} parent=5 // pred_check
        _
      $region10: #{tpu_custom_call.1} parent=5 // pred_check_branch
        %163 = sbr.rel (%p160) target = $region12
      $region11: #{tpu_custom_call.1} parent=5 // pred_region
        %s164 = ssub.s32 %s14, 1
        // Predicated region
        $region13: #{tpu_custom_call.1} parent=11 // pred_check
          %p165 = pneg %p61
        $region14: #{tpu_custom_call.1} parent=11 // pred_check_branch
          %167 = sbr.rel (%p165) target = $region16
        $region15: #{tpu_custom_call.1} parent=11 // pred_region
          _
        $region16: #{tpu_custom_call.1} parent=11 // pred_fallthru
          _
        // Predicated region
        $region17: #{tpu_custom_call.1} parent=11 // pred_check
          %p168 = pneg %p82
        $region18: #{tpu_custom_call.1} parent=11 // pred_check_branch
          %170 = sbr.rel (%p168) target = $region20
        $region19: #{tpu_custom_call.1} parent=11 // pred_region
          _
        $region20: #{tpu_custom_call.1} parent=11 // pred_fallthru
          _
        // Predicated region
        $region21: #{tpu_custom_call.1} parent=11 // pred_check
          %p171 = pneg %p103
        $region22: #{tpu_custom_call.1} parent=11 // pred_check_branch
          %173 = sbr.rel (%p171) target = $region24
        $region23: #{tpu_custom_call.1} parent=11 // pred_region
          _
        $region24: #{tpu_custom_call.1} parent=11 // pred_fallthru
          _
        // Predicated region
        $region25: #{tpu_custom_call.1} parent=11 // pred_check
          %p174 = pneg %p124
        $region26: #{tpu_custom_call.1} parent=11 // pred_check_branch
          %176 = sbr.rel (%p174) target = $region28
        $region27: #{tpu_custom_call.1} parent=11 // pred_region
          _
        $region28: #{tpu_custom_call.1} parent=11 // pred_fallthru
          _
      $region12: #{tpu_custom_call.1} parent=5 // pred_fallthru
        _
      %p177 = scmp.lt.s32.totalorder %s14, 2
      // Predicated region
      $region29: #{tpu_custom_call.1} parent=5 // pred_check
        %p178 = pneg %p177
      $region30: #{tpu_custom_call.1} parent=5 // pred_check_branch
        %180 = sbr.rel (%p178) target = $region32
      $region31: #{tpu_custom_call.1} parent=5 // pred_region
        // Predicated region
        $region33: #{tpu_custom_call.1} parent=31 // pred_check
          %p181 = pneg %p34
        $region34: #{tpu_custom_call.1} parent=31 // pred_check_branch
          %183 = sbr.rel (%p181) target = $region36
        $region35: #{tpu_custom_call.1} parent=31 // pred_region
          %p184 = scmp.lt.s32.totalorder %s14, 1
          %s185 = scalar_select %p184, %s14, 1
          %s186 = smul.addr %s185, 3
          %s187 = smul.addr %s186, 4
          %s188 = scalar_lea.vmem %s0, %s187
        $region36: #{tpu_custom_call.1} parent=31 // pred_fallthru
          _
      $region32: #{tpu_custom_call.1} parent=5 // pred_fallthru
        _
      %p189 = scmp.le.s32.totalorder 1, %s14
      %p190 = scmp.lt.s32.totalorder %s14, 3
      %p191 = pnand %p189, %p190
      %p192 = pneg %p191
      // Predicated region
      $region37: #{tpu_custom_call.1} parent=5 // pred_check
        _
      $region38: #{tpu_custom_call.1} parent=5 // pred_check_branch
        %194 = sbr.rel (%p191) target = $region40
      $region39: #{tpu_custom_call.1} parent=5 // pred_region
        %s195 = ssub.s32 %s14, 1
        %p196 = scmp.lt.s32.totalorder %s19, 1
        %s197 = scalar_select %p196, %s19, 1
        %s198 = smul.addr %s197, 3
        %s199 = smul.addr %s198, 4
        %s200 = scalar_lea.vmem %s0, %s199
        %p201 = pneg %p40
        %p202 = pneg %p37
        %p203 = pneg %p61
        %p204 = pneg %p58
        %p205 = pneg %p82
        %p206 = pneg %p79
        %p207 = pneg %p103
        %p208 = pneg %p100
        %p209 = pneg %p124
        %p210 = pneg %p121
        %p211 = pneg %p150
        %p212 = pneg %p147
        %s213 = sand.u32 %s137, 1
        %s214 = scalar_lea.sflag [#allocation3], %s213
        %s215 = sand.u32 %s137, 1
        %s216 = scalar_lea.vmem [#allocation2], %s215
        %p217 = scmp.lt.s32.totalorder %s19, 1
        %s218 = scalar_select %p217, %s19, 1
        %s219 = smul.addr %s218, 3
        %s220 = smul.addr %s219, 4
        %s221 = scalar_lea.vmem %s0, %s220
        %v223 = vld [vmem:[%s221] sm:$0xf]
        %v224 = vld [vmem:[%s221 + $0x4] sm:$0xf]
        %v225 = vld [vmem:[%s221 + $0x8] sm:$0x1]
        %v226 = vld [vmem:[%s1] sm:$0xf]
        %v227 = vld [vmem:[%s1 + $0x4] sm:$0xf]
        %v228 = vld [vmem:[%s1 + $0x8] sm:$0xf]
        %v229 = vld [vmem:[%s1 + $0xc] sm:$0xf]
        %v230 = vld [vmem:[%s1 + $0x10] sm:$0xf]
        %v231 = vld [vmem:[%s1 + $0x14] sm:$0xf]
        %v232 = vld [vmem:[%s1 + $0x18] sm:$0xf]
        %v233 = vld [vmem:[%s1 + $0x1c] sm:$0xf]
        %v234 = vld [vmem:[%s1 + $0x20] sm:$0xf]
        %s235 = scalar_lea.vmem %s1, 36
        %v236 = vld [vmem:[%s235] sm:$0xf]
        %v237 = vld [vmem:[%s235 + $0x4] sm:$0xf]
        %v238 = vld [vmem:[%s235 + $0x8] sm:$0xf]
        %v239 = vld [vmem:[%s235 + $0xc] sm:$0xf]
        %v240 = vld [vmem:[%s235 + $0x10] sm:$0xf]
        %v241 = vld [vmem:[%s235 + $0x14] sm:$0xf]
        %v242 = vld [vmem:[%s235 + $0x18] sm:$0xf]
        %v243 = vld [vmem:[%s235 + $0x1c] sm:$0xf]
        %v244 = vld [vmem:[%s235 + $0x20] sm:$0xf]
        %v248 = vunpack.c.l.b16 %v223
        %v249 = vunpack.c.l.b16 %v224
        %v250 = vunpack.c.l.b16 %v225
        %v251 = vpack.c.b16 %v249, %v248
        %v252 = vpack.c.b16 %v250, %v250
        %vm253 = vsmask.f32 7424
        %v255 = vshrl.u32 %v251, 16
        %v257 = vshll.u32 %v251, 16
        %v259 = vrot.slane %v257, 1
        %v260 = vor.u32 %v255, %v259
        %v262 = vshll.u32 %v252, 16
        %v264 = vrot.slane %v262, 1
        %v265 = vsel %vm253, %v260, %v264
        %v275 = vunpack.c.l.b16 %v236
        %v276 = vunpack.c.l.b16 %v237
        %v277 = vunpack.c.l.b16 %v238
        %v278 = vunpack.c.l.b16 %v239
        %v279 = vunpack.c.l.b16 %v240
        %v280 = vunpack.c.l.b16 %v241
        %v281 = vunpack.c.l.b16 %v242
        %v282 = vunpack.c.l.b16 %v243
        %v283 = vunpack.c.l.b16 %v244
        %v284 = vpack.c.b16 %v276, %v275
        %v285 = vpack.c.b16 %v278, %v277
        %v286 = vpack.c.b16 %v280, %v279
        %v287 = vpack.c.b16 %v282, %v281
        %v288 = vpack.c.b16 %v283, %v283
        %vm293 = vcmask 588800
        %v295 = vsel %vm293, %v265, 0
        %vm297 = vcmask 1043456
        %v299 = vsel %vm297, %v288, 0
        %301 = vmatprep.subr.bf16.mxu0 0
        %302 = vmatpush1.bf16.msra.mxu0 0
        %303 = vmatprep.subr.bf16.mxu0 0
        %304 = vmatpush1.bf16.msra.mxu0 0
        %305 = vmatprep.subr.bf16.mxu0 0
        %306 = vmatpush1.bf16.msra.mxu0 0
        %307 = vmatprep.subr.bf16.mxu0 0
        %308 = vmatpush1.bf16.msra.mxu0 %v299
        %309 = vmatprep.subr.bf16.mxu0 0
        %310 = vmatpush1.bf16.msra.mxu0 %v287
        %311 = vmatprep.subr.bf16.mxu0 0
        %312 = vmatpush1.bf16.msra.mxu0 %v286
        %313 = vmatprep.subr.bf16.mxu0 0
        %314 = vmatpush1.bf16.msra.mxu0 %v285
        %315 = vmatprep.subr.bf16.mxu0 0
        %316 = vmatpush1.bf16.msra.mxu0 %v284
        %317 = vmatprep.subr.bf16.mxu0 0
        %318 = vmatpush2.bf16.msra.mxu0 0
        %319 = vmatprep.subr.bf16.mxu0 0
        %320 = vmatpush2.bf16.msra.mxu0 0
        %321 = vmatprep.subr.bf16.mxu0 0
        %322 = vmatpush2.bf16.msra.mxu0 0
        %323 = vmatprep.subr.bf16.mxu0 0
        %324 = vmatpush2.bf16.msra.mxu0 0
        %325 = vmatprep.subr.bf16.mxu0 0
        %326 = vmatpush2.bf16.msra.mxu0 0
        %327 = vmatprep.subr.bf16.mxu0 0
        %328 = vmatpush2.bf16.msra.mxu0 0
        %329 = vmatprep.subr.bf16.mxu0 0
        %330 = vmatpush2.bf16.msra.mxu0 0
        %331 = vmatprep.subr.bf16.mxu0 0
        %332 = vmatpush2.bf16.msra.mxu0 0
        %333 = vmatprep.mubr.bf16.mxu0 0
        %334 = vmatmul.mubr.bf16.gmra.mxu0 %v295
        %v335 = vpop.f32.mrf.mxu0
        %v336 = vadd.f32 0.0, %v335
        %v337 = vpop.f32.mrf.mxu0
        %v338 = vpop.f32.mrf.mxu0
        %v339 = vadd.f32 0.0, %v338
        %v340 = vpop.f32.mrf.mxu0
        %341 = vdwg.mxu0
        %v351 = vunpack.c.l.b16 %v226
        %v352 = vunpack.c.l.b16 %v227
        %v353 = vunpack.c.l.b16 %v228
        %v354 = vunpack.c.l.b16 %v229
        %v355 = vunpack.c.l.b16 %v230
        %v356 = vunpack.c.l.b16 %v231
        %v357 = vunpack.c.l.b16 %v232
        %v358 = vunpack.c.l.b16 %v233
        %v359 = vunpack.c.l.b16 %v234
        %v360 = vpack.c.b16 %v352, %v351
        %v361 = vpack.c.b16 %v354, %v353
        %v362 = vpack.c.b16 %v356, %v355
        %v363 = vpack.c.b16 %v358, %v357
        %v364 = vpack.c.b16 %v359, %v359
        %v369 = vsel %vm293, %v251, 0
        %v372 = vsel %vm297, %v364, 0
        %374 = vmatprep.subr.bf16.mxu0 0
        %375 = vmatpush1.bf16.msra.mxu0 0
        %376 = vmatprep.subr.bf16.mxu0 0
        %377 = vmatpush1.bf16.msra.mxu0 0
        %378 = vmatprep.subr.bf16.mxu0 0
        %379 = vmatpush1.bf16.msra.mxu0 0
        %380 = vmatprep.subr.bf16.mxu0 0
        %381 = vmatpush1.bf16.msra.mxu0 %v372
        %382 = vmatprep.subr.bf16.mxu0 0
        %383 = vmatpush1.bf16.msra.mxu0 %v363
        %384 = vmatprep.subr.bf16.mxu0 0
        %385 = vmatpush1.bf16.msra.mxu0 %v362
        %386 = vmatprep.subr.bf16.mxu0 0
        %387 = vmatpush1.bf16.msra.mxu0 %v361
        %388 = vmatprep.subr.bf16.mxu0 0
        %389 = vmatpush1.bf16.msra.mxu0 %v360
        %390 = vmatprep.subr.bf16.mxu0 0
        %391 = vmatpush2.bf16.msra.mxu0 0
        %392 = vmatprep.subr.bf16.mxu0 0
        %393 = vmatpush2.bf16.msra.mxu0 0
        %394 = vmatprep.subr.bf16.mxu0 0
        %395 = vmatpush2.bf16.msra.mxu0 0
        %396 = vmatprep.subr.bf16.mxu0 0
        %397 = vmatpush2.bf16.msra.mxu0 0
        %398 = vmatprep.subr.bf16.mxu0 0
        %399 = vmatpush2.bf16.msra.mxu0 0
        %400 = vmatprep.subr.bf16.mxu0 0
        %401 = vmatpush2.bf16.msra.mxu0 0
        %402 = vmatprep.subr.bf16.mxu0 0
        %403 = vmatpush2.bf16.msra.mxu0 0
        %404 = vmatprep.subr.bf16.mxu0 0
        %405 = vmatpush2.bf16.msra.mxu0 0
        %406 = vmatprep.mubr.bf16.mxu0 0
        %407 = vmatmul.mubr.bf16.gmra.mxu0 %v369
        %v408 = vpop.f32.mrf.mxu0
        %v409 = vadd.f32 %v336, %v408
        %v410 = vpop.f32.mrf.mxu0
        %v411 = vpop.f32.mrf.mxu0
        %v412 = vadd.f32 %v339, %v411
        %v413 = vpop.f32.mrf.mxu0
        %414 = vdwg.mxu0
        %s415 = scalar_lea.vmem %s1, 72
        %v416 = vld [vmem:[%s415] sm:$0xf]
        %v417 = vld [vmem:[%s415 + $0x4] sm:$0xf]
        %v418 = vld [vmem:[%s415 + $0x8] sm:$0xf]
        %v419 = vld [vmem:[%s415 + $0xc] sm:$0xf]
        %v420 = vld [vmem:[%s415 + $0x10] sm:$0xf]
        %v421 = vld [vmem:[%s415 + $0x14] sm:$0xf]
        %v422 = vld [vmem:[%s415 + $0x18] sm:$0xf]
        %v423 = vld [vmem:[%s415 + $0x1c] sm:$0xf]
        %v424 = vld [vmem:[%s415 + $0x20] sm:$0xf]
        %vm425 = vcmask 1046528
        %v426 = vrot.slane %v251, 1
        %v427 = vrot.slane %v252, 1
        %v428 = vsel %vm425, %v426, %v427
        %v438 = vunpack.c.l.b16 %v416
        %v439 = vunpack.c.l.b16 %v417
        %v440 = vunpack.c.l.b16 %v418
        %v441 = vunpack.c.l.b16 %v419
        %v442 = vunpack.c.l.b16 %v420
        %v443 = vunpack.c.l.b16 %v421
        %v444 = vunpack.c.l.b16 %v422
        %v445 = vunpack.c.l.b16 %v423
        %v446 = vunpack.c.l.b16 %v424
        %v447 = vpack.c.b16 %v439, %v438
        %v448 = vpack.c.b16 %v441, %v440
        %v449 = vpack.c.b16 %v443, %v442
        %v450 = vpack.c.b16 %v445, %v444
        %v451 = vpack.c.b16 %v446, %v446
        %v457 = vsel %vm293, %v428, 0
        %v460 = vsel %vm297, %v451, 0
        %462 = vmatprep.subr.bf16.mxu0 0
        %463 = vmatpush1.bf16.msra.mxu0 0
        %464 = vmatprep.subr.bf16.mxu0 0
        %465 = vmatpush1.bf16.msra.mxu0 0
        %466 = vmatprep.subr.bf16.mxu0 0
        %467 = vmatpush1.bf16.msra.mxu0 0
        %468 = vmatprep.subr.bf16.mxu0 0
        %469 = vmatpush1.bf16.msra.mxu0 %v460
        %470 = vmatprep.subr.bf16.mxu0 0
        %471 = vmatpush1.bf16.msra.mxu0 %v450
        %472 = vmatprep.subr.bf16.mxu0 0
        %473 = vmatpush1.bf16.msra.mxu0 %v449
        %474 = vmatprep.subr.bf16.mxu0 0
        %475 = vmatpush1.bf16.msra.mxu0 %v448
        %476 = vmatprep.subr.bf16.mxu0 0
        %477 = vmatpush1.bf16.msra.mxu0 %v447
        %478 = vmatprep.subr.bf16.mxu0 0
        %479 = vmatpush2.bf16.msra.mxu0 0
        %480 = vmatprep.subr.bf16.mxu0 0
        %481 = vmatpush2.bf16.msra.mxu0 0
        %482 = vmatprep.subr.bf16.mxu0 0
        %483 = vmatpush2.bf16.msra.mxu0 0
        %484 = vmatprep.subr.bf16.mxu0 0
        %485 = vmatpush2.bf16.msra.mxu0 0
        %486 = vmatprep.subr.bf16.mxu0 0
        %487 = vmatpush2.bf16.msra.mxu0 0
        %488 = vmatprep.subr.bf16.mxu0 0
        %489 = vmatpush2.bf16.msra.mxu0 0
        %490 = vmatprep.subr.bf16.mxu0 0
        %491 = vmatpush2.bf16.msra.mxu0 0
        %492 = vmatprep.subr.bf16.mxu0 0
        %493 = vmatpush2.bf16.msra.mxu0 0
        %494 = vmatprep.mubr.bf16.mxu0 0
        %495 = vmatmul.mubr.bf16.gmra.mxu0 %v457
        %v496 = vpop.f32.mrf.mxu0
        %v497 = vadd.f32 0.0, %v496
        %v498 = vpop.f32.mrf.mxu0
        %v499 = vpop.f32.mrf.mxu0
        %v500 = vadd.f32 0.0, %v499
        %v501 = vpop.f32.mrf.mxu0
        %502 = vdwg.mxu0
        %v503 = vadd.f32 %v409, %v497
        %v504 = vadd.f32 %v412, %v500
        %v505 = vld [vmem:[%s2] sm:$0x1]
        %v507 = vlaneseq
        %v508 = vshrl.u32 %v507, 7
        %v509 = vsub.s32 0, %v508
        %v510 = vrot.slane %v505, %v509
        %v512 = vadd.f32 %v503, %v510
        %v513 = vadd.f32 %v504, %v510
        %v514 = vmax.f32 %v512, 0.0
        %v515 = vmax.f32 %v513, 0.0
        %v516 = vadd.f32 %v514, %v515
        %v517 = vrot.slane %v516, 4
        %v518 = vadd.f32 %v516, %v517
        %v519 = vrot.slane %v518, 2
        %v520 = vadd.f32 %v518, %v519
        %v521 = vrot.slane %v520, 1
        %v522 = vadd.f32 %v520, %v521
        %v523 = vmul.f32 %v522, 0.00390625
        %v524 = vld [vmem:[%s3] sm:$0xff]
        %v525 = vld [vmem:[%s3 + $0x8] sm:$0xff]
        %v526 = vld [vmem:[%s3 + $0x10] sm:$0xff]
        %v527 = vld [vmem:[%s3 + $0x18] sm:$0xff]
        %v528 = vld [vmem:[%s3 + $0x20] sm:$0xff]
        %v529 = vld [vmem:[%s3 + $0x28] sm:$0xff]
        %v530 = vld [vmem:[%s3 + $0x30] sm:$0xff]
        %v531 = vld [vmem:[%s3 + $0x38] sm:$0xff]
        %v532 = vld [vmem:[%s3 + $0x40] sm:$0xff]
        %v533 = vld [vmem:[%s3 + $0x48] sm:$0xff]
        %v534 = vld [vmem:[%s3 + $0x50] sm:$0xff]
        %v535 = vld [vmem:[%s3 + $0x58] sm:$0xff]
        %v536 = vld [vmem:[%s3 + $0x60] sm:$0xff]
        %v537 = vld [vmem:[%s3 + $0x68] sm:$0xff]
        %v538 = vld [vmem:[%s3 + $0x70] sm:$0xff]
        %v539 = vld [vmem:[%s3 + $0x78] sm:$0xff]
        %v540 = vld [vmem:[%s4] sm:$0x1]
        %541 = vmatprep.subr.mxu0 0.0
        %542 = vmatpush1.msra.mxu0 %v539
        %543 = vmatprep.subr.mxu0 0.0
        %544 = vmatpush1.msra.mxu0 %v538
        %545 = vmatprep.subr.mxu0 0.0
        %546 = vmatpush1.msra.mxu0 %v537
        %547 = vmatprep.subr.mxu0 0.0
        %548 = vmatpush1.msra.mxu0 %v536
        %549 = vmatprep.subr.mxu0 0.0
        %550 = vmatpush1.msra.mxu0 %v535
        %551 = vmatprep.subr.mxu0 0.0
        %552 = vmatpush1.msra.mxu0 %v534
        %553 = vmatprep.subr.mxu0 0.0
        %554 = vmatpush1.msra.mxu0 %v533
        %555 = vmatprep.subr.mxu0 0.0
        %556 = vmatpush1.msra.mxu0 %v532
        %557 = vmatprep.subr.mxu0 0.0
        %558 = vmatpush1.msra.mxu0 %v531
        %559 = vmatprep.subr.mxu0 0.0
        %560 = vmatpush1.msra.mxu0 %v530
        %561 = vmatprep.subr.mxu0 0.0
        %562 = vmatpush1.msra.mxu0 %v529
        %563 = vmatprep.subr.mxu0 0.0
        %564 = vmatpush1.msra.mxu0 %v528
        %565 = vmatprep.subr.mxu0 0.0
        %566 = vmatpush1.msra.mxu0 %v527
        %567 = vmatprep.subr.mxu0 0.0
        %568 = vmatpush1.msra.mxu0 %v526
        %569 = vmatprep.subr.mxu0 0.0
        %570 = vmatpush1.msra.mxu0 %v525
        %571 = vmatprep.subr.mxu0 0.0
        %572 = vmatpush1.msra.mxu0 %v524
        %573 = vmatprep.subr.mxu0 0.0
        %574 = vmatpush2.msra.mxu0 0.0
        %575 = vmatprep.subr.mxu0 0.0
        %576 = vmatpush2.msra.mxu0 0.0
        %577 = vmatprep.subr.mxu0 0.0
        %578 = vmatpush2.msra.mxu0 0.0
        %579 = vmatprep.subr.mxu0 0.0
        %580 = vmatpush2.msra.mxu0 0.0
        %581 = vmatprep.subr.mxu0 0.0
        %582 = vmatpush2.msra.mxu0 0.0
        %583 = vmatprep.subr.mxu0 0.0
        %584 = vmatpush2.msra.mxu0 0.0
        %585 = vmatprep.subr.mxu0 0.0
        %586 = vmatpush2.msra.mxu0 0.0
        %587 = vmatprep.subr.mxu0 0.0
        %588 = vmatpush2.msra.mxu0 0.0
        %589 = vmatprep.subr.mxu0 0.0
        %590 = vmatpush2.msra.mxu0 0.0
        %591 = vmatprep.subr.mxu0 0.0
        %592 = vmatpush2.msra.mxu0 0.0
        %593 = vmatprep.subr.mxu0 0.0
        %594 = vmatpush2.msra.mxu0 0.0
        %595 = vmatprep.subr.mxu0 0.0
        %596 = vmatpush2.msra.mxu0 0.0
        %597 = vmatprep.subr.mxu0 0.0
        %598 = vmatpush2.msra.mxu0 0.0
        %599 = vmatprep.subr.mxu0 0.0
        %600 = vmatpush2.msra.mxu0 0.0
        %601 = vmatprep.subr.mxu0 0.0
        %602 = vmatpush2.msra.mxu0 0.0
        %603 = vmatprep.subr.mxu0 0.0
        %604 = vmatpush2.msra.mxu0 0.0
        %605 = vmatprep.mubr.f32.mxu0 0.0
        %606 = vmatmul.mubr.f32.gmra.mxu0 %v523
        %v607 = vpop.f32.mrf.mxu0
        %v608 = vadd.f32 %v540, %v607
        %v609 = vpop.f32.mrf.mxu0
        %610 = vdwg.mxu0
        %vm611 = vcmask 253952
        %612 = vst.msk [vmem:[%s216] sm:$0x1] %vm611, %v608
        %s613 = sand.u32 %s137, 1
        %s614 = scalar_lea.sflag [#allocation3], %s613
        %s615 = sand.u32 %s137, 1
        %s616 = scalar_lea.vmem [#allocation2], %s615
        // Predicated region
        $region41: #{tpu_custom_call.1} parent=39 // pred_check
          %p617 = pneg %p147
        $region42: #{tpu_custom_call.1} parent=39 // pred_check_branch
          %619 = sbr.rel (%p617) target = $region44
        $region43: #{tpu_custom_call.1} parent=39 // pred_region
          %s621 = ssub.s32 16, 16
          %622 = vsyncadd %s614, %s621
          %s623 = smul.addr %s19, 16
          %s624 = scalar_lea.hbm %s5, %s623
          %s626 = sshll.u32 %s616, 4
          %s627 = int_to_ptr.vmem [resolvable:$true] %s626
          %629 = dma.vmem_to_hbm [thread:$0]  %s627, 16, %s624, %s614
        $region44: #{tpu_custom_call.1} parent=39 // pred_fallthru
          _
      $region40: #{tpu_custom_call.1} parent=5 // pred_fallthru
        _
      %p630 = scmp.le.s32.totalorder 2, %s14
      // Predicated region
      $region45: #{tpu_custom_call.1} parent=5 // pred_check
        %p631 = pneg %p630
      $region46: #{tpu_custom_call.1} parent=5 // pred_check_branch
        %633 = sbr.rel (%p631) target = $region48
      $region47: #{tpu_custom_call.1} parent=5 // pred_region
        %s634 = ssub.s32 %s14, 2
        // Predicated region
        $region49: #{tpu_custom_call.1} parent=47 // pred_check
          %p635 = pneg %p153
        $region50: #{tpu_custom_call.1} parent=47 // pred_check_branch
          %637 = sbr.rel (%p635) target = $region52
        $region51: #{tpu_custom_call.1} parent=47 // pred_region
          %s638 = sand.u32 %s138, 1
          %s639 = scalar_lea.sflag [#allocation3], %s638
          %s640 = sand.u32 %s138, 1
          %s641 = scalar_lea.vmem [#allocation2], %s640
          %642 = dma.done %s639, 16
        $region52: #{tpu_custom_call.1} parent=47 // pred_fallthru
          _
      $region48: #{tpu_custom_call.1} parent=5 // pred_fallthru
        _
    $region6: #{tpu_custom_call.1} parent=1 // loop_footer
      %s18 = sadd.s32 1, %s14
    $region7: #{tpu_custom_call.1} parent=1 // loop_footer_branch
      %13 = sbr.rel target = $region3
    $region8: #{tpu_custom_call.1} parent=1 // loop_exit
      _
    %643 = vsyncpa [#allocation3], 1
    %s644 = scalar_lea.sflag [#allocation3], 1
    %645 = vsyncpa %s644, 1

</llo_original>
